<compile_context>
chip_gen: v7x
topology: tpu7x:2x2x1
jax: 0.10.0
libtpu: 0.0.40
codegen_flags: <defaults>
</compile_context>

<pallas_src>
import functools

import jax
import jax.numpy as jnp
from jax import lax
from jax.experimental import pallas as pl
from jax.experimental.pallas import tpu as pltpu


def _round_up(x, m):
    return ((x + m - 1) // m) * m


def _make_pearson_kernel(n_total):
    """Build the kernel closure with the true (unpadded) N baked in."""
    inv_n = 1.0 / float(n_total)
    inv_nm1 = 1.0 / float(max(n_total - 1, 1))  # torch.var uses ddof=1

    def kernel(pred_ref, target_ref, out_ref,
               sp_ref, st_ref, spp_ref, stt_ref, spt_ref):
        n_idx = pl.program_id(1)

        @pl.when(n_idx == 0)
        def _init():
            sp_ref[...] = jnp.zeros_like(sp_ref)
            st_ref[...] = jnp.zeros_like(st_ref)
            spp_ref[...] = jnp.zeros_like(spp_ref)
            stt_ref[...] = jnp.zeros_like(stt_ref)
            spt_ref[...] = jnp.zeros_like(spt_ref)

        # Cast happens in-register; DMA moved the native dtype.
        p = pred_ref[...].astype(jnp.float32)    # (TB, TN)
        t = target_ref[...].astype(jnp.float32)  # (TB, TN)

        # Raw-moment partial sums per row (lane reductions -> XLU slot,
        # products -> VPU slot; loop stays DMA-bound).
        sp_ref[...] += jnp.sum(p, axis=1, keepdims=True)
        st_ref[...] += jnp.sum(t, axis=1, keepdims=True)
        spp_ref[...] += jnp.sum(p * p, axis=1, keepdims=True)
        stt_ref[...] += jnp.sum(t * t, axis=1, keepdims=True)
        spt_ref[...] += jnp.sum(p * t, axis=1, keepdims=True)

        @pl.when(n_idx == pl.num_programs(1) - 1)
        def _finalize():
            sp = sp_ref[...]
            st = st_ref[...]
            ss_p = spp_ref[...] - sp * sp * inv_n
            ss_t = stt_ref[...] - st * st * inv_n
            ss_pt = spt_ref[...] - sp * st * inv_n

            var_p = ss_p * inv_nm1
            var_t = ss_t * inv_nm1

            # Pearson correlation = off-diagonal of torch.corrcoef.
            corr = ss_pt * lax.rsqrt(ss_p * ss_t)

            valid = ((var_p > 1e-5) & (var_t > 1e-5)
                     & jnp.logical_not(jnp.isnan(corr)))
            # valid row: 1 - corr ; degenerate/NaN row: 1.0
            out_ref[...] = jnp.where(valid, 1.0 - corr, jnp.float32(1.0))

    return kernel


@functools.partial(jax.jit, static_argnames=("tile_b", "tile_n"))
def pearson_loss(pred, target, *, tile_b=256, tile_n=2048):
    """pred, target: (B, N) arrays. Returns scalar loss (float32)."""
    assert pred.shape == target.shape and pred.ndim == 2
    B, N = pred.shape

    # Tile sizes: clamp to (padded) array size, keep (8, 128) alignment.
    tb = _round_up(min(tile_b, _round_up(B, 8)), 8)
    tn = _round_up(min(tile_n, _round_up(N, 128)), 128)
    Bp = _round_up(B, tb)
    Np = _round_up(N, tn)

    # Zero padding is benign for the raw-moment sums (zeros contribute
    # nothing); the finalize step uses the true N, and padded rows are
    # sliced away before the batch mean.
    if (Bp, Np) != (B, N):
        pred = jnp.pad(pred, ((0, Bp - B), (0, Np - N)))
        target = jnp.pad(target, ((0, Bp - B), (0, Np - N)))

    grid = (Bp // tb, Np // tn)
    kernel = _make_pearson_kernel(N)

    contrib = pl.pallas_call(
        kernel,
        out_shape=jax.ShapeDtypeStruct((Bp, 1), jnp.float32),
        grid_spec=pltpu.PrefetchScalarGridSpec(
            num_scalar_prefetch=0,
            grid=grid,
            in_specs=[
                pl.BlockSpec((tb, tn), lambda b, n: (b, n)),
                pl.BlockSpec((tb, tn), lambda b, n: (b, n)),
            ],
            out_specs=pl.BlockSpec((tb, 1), lambda b, n: (b, 0)),
            scratch_shapes=[pltpu.VMEM((tb, 1), jnp.float32)] * 5,
        ),
        compiler_params=pltpu.CompilerParams(
            dimension_semantics=("parallel", "arbitrary"),
            vmem_limit_bytes=32 * 1024 * 1024,
        ),
    )(pred, target)

    # Final mean over the (real) batch in the wrapper.
    return jnp.sum(contrib[:B, 0]) / jnp.float32(B)


def pearson_loss_ref(pred, target):
    """Pure-JAX reference mirroring the PyTorch module (centered form)."""
    B, N = pred.shape
    p = pred.astype(jnp.float32)
    t = target.astype(jnp.float32)
    dp = p - p.mean(axis=1, keepdims=True)
    dt = t - t.mean(axis=1, keepdims=True)
    ss_p = (dp * dp).sum(axis=1)
    ss_t = (dt * dt).sum(axis=1)
    ss_pt = (dp * dt).sum(axis=1)
    var_p = ss_p / (N - 1)
    var_t = ss_t / (N - 1)
    corr = ss_pt / jnp.sqrt(ss_p * ss_t)
    valid = (var_p > 1e-5) & (var_t > 1e-5) & ~jnp.isnan(corr)
    contrib = jnp.where(valid, 1.0 - corr, 1.0)
    return contrib.sum() / B


if __name__ == "__main__":
    key = jax.random.PRNGKey(0)
    k1, k2 = jax.random.split(key)
    B, N = 16, 256
    pred = jax.random.normal(k1, (B, N), dtype=jnp.float32)
    # target partially correlated with pred
    target = 0.7 * pred + 0.3 * jax.random.normal(k2, (B, N), dtype=jnp.float32)
    # one degenerate (constant) row exercises the variance<=1e-5 branch
    # TODO(synk): the PyTorch module's `print('Présencede NaN')` side effect is
    # not reproduced inside the kernel (the 1.0 contribution is).
    target = target.at[0].set(jnp.ones((N,), dtype=jnp.float32))

    ref = pearson_loss_ref(pred, target)

    # Default (large-tile) config: whole problem fits in one block.
    loss = pearson_loss(pred, target)
    jax.block_until_ready(loss)
    assert jnp.allclose(loss, ref, atol=1e-4, rtol=1e-4), (loss, ref)

    # Force a multi-tile grid (2 B-tiles x 2 N-tiles) to exercise the
    # init / accumulate / finalize pipeline path.
    loss_tiled = pearson_loss(pred, target, tile_b=8, tile_n=128)
    jax.block_until_ready(loss_tiled)
    assert jnp.allclose(loss_tiled, ref, atol=1e-4, rtol=1e-4), (loss_tiled, ref)

    print("KERNEL_OK")
</pallas_src>

<mosaic_0001>
module attributes {stable_mosaic.version = 11 : i64} {
  func.func @kernel(%arg0: i32, %arg1: i32, %arg2: memref<16x256xf32, #tpu.memory_space<vmem>>, %arg3: memref<16x256xf32, #tpu.memory_space<vmem>>, %arg4: memref<16x1xf32, #tpu.memory_space<vmem>>, %arg5: memref<16x1xf32, #tpu.memory_space<vmem>>, %arg6: memref<16x1xf32, #tpu.memory_space<vmem>>, %arg7: memref<16x1xf32, #tpu.memory_space<vmem>>, %arg8: memref<16x1xf32, #tpu.memory_space<vmem>>, %arg9: memref<16x1xf32, #tpu.memory_space<vmem>>) attributes {dimension_semantics = [#tpu.dimension_semantics<parallel>, #tpu.dimension_semantics<arbitrary>], iteration_bounds = array<i64: 1, 1>, scalar_prefetch = 0 : i64, scratch_operands = 5 : i64, tpu.core_type = #tpu.core_type<tc>, window_params = [{transform_indices = @transform_0, window_bounds = array<i64: 16, 256>}, {transform_indices = @transform_1, window_bounds = array<i64: 16, 256>}, {transform_indices = @transform_2, window_bounds = array<i64: 16, 1>}]} {
    %c0_i32 = arith.constant 0 : i32
    %0 = arith.cmpi eq, %arg1, %c0_i32 : i32
    %1 = arith.extui %0 : i1 to i32
    %c0_i32_0 = arith.constant 0 : i32
    %2 = arith.cmpi ne, %1, %c0_i32_0 : i32
    scf.if %2 {
      %cst_30 = arith.constant 0.000000e+00 : f32
      %36 = vector.broadcast %cst_30 : f32 to vector<16x1xf32>
      %c0_31 = arith.constant 0 : index
      %c0_32 = arith.constant 0 : index
      %37 = vector.load %arg5[%c0_31, %c0_32] : memref<16x1xf32, #tpu.memory_space<vmem>>, vector<16x1xf32>
      tpu.vector_store %arg5[%c0_31, %c0_32], %36 {strides = array<i32>} : memref<16x1xf32, #tpu.memory_space<vmem>>, vector<16x1xf32>,
      %cst_33 = arith.constant 0.000000e+00 : f32
      %38 = vector.broadcast %cst_33 : f32 to vector<16x1xf32>
      %c0_34 = arith.constant 0 : index
      %c0_35 = arith.constant 0 : index
      %39 = vector.load %arg6[%c0_34, %c0_35] : memref<16x1xf32, #tpu.memory_space<vmem>>, vector<16x1xf32>
      tpu.vector_store %arg6[%c0_34, %c0_35], %38 {strides = array<i32>} : memref<16x1xf32, #tpu.memory_space<vmem>>, vector<16x1xf32>,
      %cst_36 = arith.constant 0.000000e+00 : f32
      %40 = vector.broadcast %cst_36 : f32 to vector<16x1xf32>
      %c0_37 = arith.constant 0 : index
      %c0_38 = arith.constant 0 : index
      %41 = vector.load %arg7[%c0_37, %c0_38] : memref<16x1xf32, #tpu.memory_space<vmem>>, vector<16x1xf32>
      tpu.vector_store %arg7[%c0_37, %c0_38], %40 {strides = array<i32>} : memref<16x1xf32, #tpu.memory_space<vmem>>, vector<16x1xf32>,
      %cst_39 = arith.constant 0.000000e+00 : f32
      %42 = vector.broadcast %cst_39 : f32 to vector<16x1xf32>
      %c0_40 = arith.constant 0 : index
      %c0_41 = arith.constant 0 : index
      %43 = vector.load %arg8[%c0_40, %c0_41] : memref<16x1xf32, #tpu.memory_space<vmem>>, vector<16x1xf32>
      tpu.vector_store %arg8[%c0_40, %c0_41], %42 {strides = array<i32>} : memref<16x1xf32, #tpu.memory_space<vmem>>, vector<16x1xf32>,
      %cst_42 = arith.constant 0.000000e+00 : f32
      %44 = vector.broadcast %cst_42 : f32 to vector<16x1xf32>
      %c0_43 = arith.constant 0 : index
      %c0_44 = arith.constant 0 : index
      %45 = vector.load %arg9[%c0_43, %c0_44] : memref<16x1xf32, #tpu.memory_space<vmem>>, vector<16x1xf32>
      tpu.vector_store %arg9[%c0_43, %c0_44], %44 {strides = array<i32>} : memref<16x1xf32, #tpu.memory_space<vmem>>, vector<16x1xf32>,
    } else {
    }
    %c0 = arith.constant 0 : index
    %c0_1 = arith.constant 0 : index
    %3 = vector.load %arg2[%c0, %c0_1] : memref<16x256xf32, #tpu.memory_space<vmem>>, vector<16x256xf32>
    %c0_2 = arith.constant 0 : index
    %c0_3 = arith.constant 0 : index
    %4 = vector.load %arg3[%c0_2, %c0_3] : memref<16x256xf32, #tpu.memory_space<vmem>>, vector<16x256xf32>
    %c0_4 = arith.constant 0 : index
    %c0_5 = arith.constant 0 : index
    %5 = vector.load %arg5[%c0_4, %c0_5] : memref<16x1xf32, #tpu.memory_space<vmem>>, vector<16x1xf32>
    %cst = arith.constant dense<0.000000e+00> : vector<16xf32>
    %6 = vector.multi_reduction <add>, %3, %cst [1] : vector<16x256xf32> to vector<16xf32>
    %7 = vector.shape_cast %6 : vector<16xf32> to vector<16x1xf32>
    %8 = arith.addf %5, %7 : vector<16x1xf32>
    %c0_6 = arith.constant 0 : index
    %c0_7 = arith.constant 0 : index
    %9 = vector.load %arg5[%c0_6, %c0_7] : memref<16x1xf32, #tpu.memory_space<vmem>>, vector<16x1xf32>
    tpu.vector_store %arg5[%c0_6, %c0_7], %8 {strides = array<i32>} : memref<16x1xf32, #tpu.memory_space<vmem>>, vector<16x1xf32>,
    %c0_8 = arith.constant 0 : index
    %c0_9 = arith.constant 0 : index
    %10 = vector.load %arg6[%c0_8, %c0_9] : memref<16x1xf32, #tpu.memory_space<vmem>>, vector<16x1xf32>
    %cst_10 = arith.constant dense<0.000000e+00> : vector<16xf32>
    %11 = vector.multi_reduction <add>, %4, %cst_10 [1] : vector<16x256xf32> to vector<16xf32>
    %12 = vector.shape_cast %11 : vector<16xf32> to vector<16x1xf32>
    %13 = arith.addf %10, %12 : vector<16x1xf32>
    %c0_11 = arith.constant 0 : index
    %c0_12 = arith.constant 0 : index
    %14 = vector.load %arg6[%c0_11, %c0_12] : memref<16x1xf32, #tpu.memory_space<vmem>>, vector<16x1xf32>
    tpu.vector_store %arg6[%c0_11, %c0_12], %13 {strides = array<i32>} : memref<16x1xf32, #tpu.memory_space<vmem>>, vector<16x1xf32>,
    %c0_13 = arith.constant 0 : index
    %c0_14 = arith.constant 0 : index
    %15 = vector.load %arg7[%c0_13, %c0_14] : memref<16x1xf32, #tpu.memory_space<vmem>>, vector<16x1xf32>
    %16 = arith.mulf %3, %3 : vector<16x256xf32>
    %cst_15 = arith.constant dense<0.000000e+00> : vector<16xf32>
    %17 = vector.multi_reduction <add>, %16, %cst_15 [1] : vector<16x256xf32> to vector<16xf32>
    %18 = vector.shape_cast %17 : vector<16xf32> to vector<16x1xf32>
    %19 = arith.addf %15, %18 : vector<16x1xf32>
    %c0_16 = arith.constant 0 : index
    %c0_17 = arith.constant 0 : index
    %20 = vector.load %arg7[%c0_16, %c0_17] : memref<16x1xf32, #tpu.memory_space<vmem>>, vector<16x1xf32>
    tpu.vector_store %arg7[%c0_16, %c0_17], %19 {strides = array<i32>} : memref<16x1xf32, #tpu.memory_space<vmem>>, vector<16x1xf32>,
    %c0_18 = arith.constant 0 : index
    %c0_19 = arith.constant 0 : index
    %21 = vector.load %arg8[%c0_18, %c0_19] : memref<16x1xf32, #tpu.memory_space<vmem>>, vector<16x1xf32>
    %22 = arith.mulf %4, %4 : vector<16x256xf32>
    %cst_20 = arith.constant dense<0.000000e+00> : vector<16xf32>
    %23 = vector.multi_reduction <add>, %22, %cst_20 [1] : vector<16x256xf32> to vector<16xf32>
    %24 = vector.shape_cast %23 : vector<16xf32> to vector<16x1xf32>
    %25 = arith.addf %21, %24 : vector<16x1xf32>
    %c0_21 = arith.constant 0 : index
    %c0_22 = arith.constant 0 : index
    %26 = vector.load %arg8[%c0_21, %c0_22] : memref<16x1xf32, #tpu.memory_space<vmem>>, vector<16x1xf32>
    tpu.vector_store %arg8[%c0_21, %c0_22], %25 {strides = array<i32>} : memref<16x1xf32, #tpu.memory_space<vmem>>, vector<16x1xf32>,
    %c0_23 = arith.constant 0 : index
    %c0_24 = arith.constant 0 : index
    %27 = vector.load %arg9[%c0_23, %c0_24] : memref<16x1xf32, #tpu.memory_space<vmem>>, vector<16x1xf32>
    %28 = arith.mulf %3, %4 : vector<16x256xf32>
    %cst_25 = arith.constant dense<0.000000e+00> : vector<16xf32>
    %29 = vector.multi_reduction <add>, %28, %cst_25 [1] : vector<16x256xf32> to vector<16xf32>
    %30 = vector.shape_cast %29 : vector<16xf32> to vector<16x1xf32>
    %31 = arith.addf %27, %30 : vector<16x1xf32>
    %c0_26 = arith.constant 0 : index
    %c0_27 = arith.constant 0 : index
    %32 = vector.load %arg9[%c0_26, %c0_27] : memref<16x1xf32, #tpu.memory_space<vmem>>, vector<16x1xf32>
    tpu.vector_store %arg9[%c0_26, %c0_27], %31 {strides = array<i32>} : memref<16x1xf32, #tpu.memory_space<vmem>>, vector<16x1xf32>,
    %c0_i32_28 = arith.constant 0 : i32
    %33 = arith.cmpi eq, %arg1, %c0_i32_28 : i32
    %34 = arith.extui %33 : i1 to i32
    %c0_i32_29 = arith.constant 0 : i32
    %35 = arith.cmpi ne, %34, %c0_i32_29 : i32
    scf.if %35 {
      %c0_30 = arith.constant 0 : index
      %c0_31 = arith.constant 0 : index
      %36 = vector.load %arg5[%c0_30, %c0_31] : memref<16x1xf32, #tpu.memory_space<vmem>>, vector<16x1xf32>
      %c0_32 = arith.constant 0 : index
      %c0_33 = arith.constant 0 : index
      %37 = vector.load %arg6[%c0_32, %c0_33] : memref<16x1xf32, #tpu.memory_space<vmem>>, vector<16x1xf32>
      %c0_34 = arith.constant 0 : index
      %c0_35 = arith.constant 0 : index
      %38 = vector.load %arg7[%c0_34, %c0_35] : memref<16x1xf32, #tpu.memory_space<vmem>>, vector<16x1xf32>
      %39 = arith.mulf %36, %36 : vector<16x1xf32>
      %cst_36 = arith.constant 3.906250e-03 : f32
      %40 = vector.broadcast %cst_36 : f32 to vector<16x1xf32>
      %41 = arith.mulf %39, %40 : vector<16x1xf32>
      %42 = arith.subf %38, %41 : vector<16x1xf32>
      %c0_37 = arith.constant 0 : index
      %c0_38 = arith.constant 0 : index
      %43 = vector.load %arg8[%c0_37, %c0_38] : memref<16x1xf32, #tpu.memory_space<vmem>>, vector<16x1xf32>
      %44 = arith.mulf %37, %37 : vector<16x1xf32>
      %cst_39 = arith.constant 3.906250e-03 : f32
      %45 = vector.broadcast %cst_39 : f32 to vector<16x1xf32>
      %46 = arith.mulf %44, %45 : vector<16x1xf32>
      %47 = arith.subf %43, %46 : vector<16x1xf32>
      %c0_40 = arith.constant 0 : index
      %c0_41 = arith.constant 0 : index
      %48 = vector.load %arg9[%c0_40, %c0_41] : memref<16x1xf32, #tpu.memory_space<vmem>>, vector<16x1xf32>
      %49 = arith.mulf %36, %37 : vector<16x1xf32>
      %cst_42 = arith.constant 3.906250e-03 : f32
      %50 = vector.broadcast %cst_42 : f32 to vector<16x1xf32>
      %51 = arith.mulf %49, %50 : vector<16x1xf32>
      %52 = arith.subf %48, %51 : vector<16x1xf32>
      %cst_43 = arith.constant 0.00392156886 : f32
      %53 = vector.broadcast %cst_43 : f32 to vector<16x1xf32>
      %54 = arith.mulf %42, %53 : vector<16x1xf32>
      %cst_44 = arith.constant 0.00392156886 : f32
      %55 = vector.broadcast %cst_44 : f32 to vector<16x1xf32>
      %56 = arith.mulf %47, %55 : vector<16x1xf32>
      %57 = arith.mulf %42, %47 : vector<16x1xf32>
      %58 = math.rsqrt %57 : vector<16x1xf32>
      %59 = arith.mulf %52, %58 : vector<16x1xf32>
      %cst_45 = arith.constant 9.99999974E-6 : f32
      %60 = vector.broadcast %cst_45 : f32 to vector<16x1xf32>
      %61 = arith.cmpf ogt, %54, %60 : vector<16x1xf32>
      %cst_46 = arith.constant 9.99999974E-6 : f32
      %62 = vector.broadcast %cst_46 : f32 to vector<16x1xf32>
      %63 = arith.cmpf ogt, %56, %62 : vector<16x1xf32>
      %64 = arith.andi %61, %63 : vector<16x1xi1>
      %65 = arith.cmpf one, %59, %59 : vector<16x1xf32>
      %cst_47 = arith.constant dense<true> : vector<16x1xi1>
      %66 = arith.xori %65, %cst_47 : vector<16x1xi1>
      %67 = arith.andi %64, %66 : vector<16x1xi1>
      %cst_48 = arith.constant 1.000000e+00 : f32
      %68 = vector.broadcast %cst_48 : f32 to vector<16x1xf32>
      %69 = arith.subf %68, %59 : vector<16x1xf32>
      %cst_49 = arith.constant 1.000000e+00 : f32
      %70 = vector.broadcast %cst_49 : f32 to vector<16x1xf32>
      %71 = arith.select %67, %69, %70 : vector<16x1xi1>, vector<16x1xf32>
      %c0_50 = arith.constant 0 : index
      %c0_51 = arith.constant 0 : index
      %72 = vector.load %arg4[%c0_50, %c0_51] : memref<16x1xf32, #tpu.memory_space<vmem>>, vector<16x1xf32>
      tpu.vector_store %arg4[%c0_50, %c0_51], %71 {strides = array<i32>} : memref<16x1xf32, #tpu.memory_space<vmem>>, vector<16x1xf32>,
    } else {
    }
    return
  }
  func.func @transform_0(%arg0: i32, %arg1: i32) -> (i32, i32) {
    %c0_i32 = arith.constant 0 : i32
    return %arg0, %arg1 : i32, i32
  }
  func.func @transform_1(%arg0: i32, %arg1: i32) -> (i32, i32) {
    %c0_i32 = arith.constant 0 : i32
    return %arg0, %arg1 : i32, i32
  }
  func.func @transform_2(%arg0: i32, %arg1: i32) -> (i32, i32) {
    %c0_i32 = arith.constant 0 : i32
    %c0_i32_0 = arith.constant 0 : i32
    return %arg0, %c0_i32 : i32, i32
  }
}

</mosaic_0001>

<llo_original>
// kernel: pearson_loss.1
$region0: #{pearson_loss.1}
  #allocation0 [shape = 'u32[]', space=smem, size = 0x4, offset = 0x4, fixed_abs, tag = 'smem constant byte address 0x4 - core index']
  #allocation1 [shape = 'u32[144,128]{1,0:T(1,128)}', space=vmem, size = 0x12000, scoped, tag = 'internal scratch']
  #allocation2 [shape = 'f32[16,1]{1,0:T(8,128)}', space=vmem, size = 0x2000, scoped, tag = 'scratch operand']
  #allocation3 [shape = 'f32[16,1]{1,0:T(8,128)}', space=vmem, size = 0x2000, scoped, tag = 'scratch operand']
  #allocation4 [shape = 'f32[16,1]{1,0:T(8,128)}', space=vmem, size = 0x2000, scoped, tag = 'scratch operand']
  #allocation5 [shape = 'f32[16,1]{1,0:T(8,128)}', space=vmem, size = 0x2000, scoped, tag = 'scratch operand']
  #allocation6 [shape = 'f32[16,1]{1,0:T(8,128)}', space=vmem, size = 0x2000, scoped, tag = 'scratch operand']
  %s0 = inlined_call_operand.hbm [shape: f32[16,256], index: 0, kind: input, shape index: {}]
  %s1 = inlined_call_operand.hbm [shape: f32[16,256], index: 1, kind: input, shape index: {}]
  %s2 = inlined_call_operand.vmem [shape: f32[16,1], index: 2, kind: output, shape index: {}]
  %s3 = sld [smem:[#allocation0]]
  $region34: #{pearson_loss.1} parent=0
    _
  %s5 = ssub.s32 1, %s3
  %s6 = scalar_select 0, %s5, %s3
  $region1: #{pearson_loss.1} parent=0
    #allocation7 [shape = 'u8[16384]{0}', space=vmem, size = 0x4000, scoped, tag = 'input window, operand 0, single buffered']
    #allocation8 [shape = 's32[1]{0}', space=sflag, size = 0x4, scoped, tag = 'scoped memory for pearson_loss.1']
    #allocation9 [shape = 'u8[16384]{0}', space=vmem, size = 0x4000, scoped, tag = 'input window, operand 1, single buffered']
    #allocation10 [shape = 's32[1]{0}', space=sflag, size = 0x4, scoped, tag = 'scoped memory for pearson_loss.1']
    %7 = vsyncpa [#allocation8], 0
    %8 = vsyncpa [#allocation10], 0
    // Predicated region
    $region2: #{pearson_loss.1} parent=1 // pred_check
      _
    $region3: #{pearson_loss.1} parent=1 // pred_check_branch
      %10 = sbr.rel (0) target = $region5
    $region4: #{pearson_loss.1} parent=1 // pred_region
      %s12 = ssub.s32 512, 512
      %13 = vsyncadd [#allocation8], %s12
      %s14 = sshll.u32 [#allocation7], 4
      %s15 = int_to_ptr.vmem [resolvable:$true] %s14
      %20 = dma.hbm_to_vmem [thread:$0]  %s0, 512, %s15, [#allocation8], 256, 256, 16
    $region5: #{pearson_loss.1} parent=1 // pred_fallthru
      _
    // Predicated region
    $region6: #{pearson_loss.1} parent=1 // pred_check
      _
    $region7: #{pearson_loss.1} parent=1 // pred_check_branch
      %22 = sbr.rel (0) target = $region9
    $region8: #{pearson_loss.1} parent=1 // pred_region
      %s24 = ssub.s32 512, 512
      %25 = vsyncadd [#allocation10], %s24
      %s26 = sshll.u32 [#allocation9], 4
      %s27 = int_to_ptr.vmem [resolvable:$true] %s26
      %32 = dma.hbm_to_vmem [thread:$0]  %s1, 512, %s27, [#allocation10], 256, 256, 16
    $region9: #{pearson_loss.1} parent=1 // pred_fallthru
      _
    // Predicated region
    $region10: #{pearson_loss.1} parent=1 // pred_check
      _
    $region11: #{pearson_loss.1} parent=1 // pred_check_branch
      %34 = sbr.rel (0) target = $region13
    $region12: #{pearson_loss.1} parent=1 // pred_region
      %35 = dma.done [#allocation8], 512
    $region13: #{pearson_loss.1} parent=1 // pred_fallthru
      _
    // Predicated region
    $region14: #{pearson_loss.1} parent=1 // pred_check
      _
    $region15: #{pearson_loss.1} parent=1 // pred_check_branch
      %37 = sbr.rel (0) target = $region17
    $region16: #{pearson_loss.1} parent=1 // pred_region
      %38 = dma.done [#allocation10], 512
    $region17: #{pearson_loss.1} parent=1 // pred_fallthru
      _
    %p39 = scmp.eq.s32.totalorder 0, 0
    // Predicated region
    $region18: #{pearson_loss.1} parent=1 // pred_check
      %p40 = pneg %p39
    $region19: #{pearson_loss.1} parent=1 // pred_check_branch
      %42 = sbr.rel (%p40) target = $region21
    $region20: #{pearson_loss.1} parent=1 // pred_region
      %vm43 = vcmask 7168
      %44 = vst.msk [vmem:[#allocation2] sm:$0xff] %vm43, 0.0
      %45 = vst.msk [vmem:[#allocation2 + $0x8] sm:$0xff] %vm43, 0.0
      %46 = vst.msk [vmem:[#allocation3] sm:$0xff] %vm43, 0.0
      %47 = vst.msk [vmem:[#allocation3 + $0x8] sm:$0xff] %vm43, 0.0
      %48 = vst.msk [vmem:[#allocation4] sm:$0xff] %vm43, 0.0
      %49 = vst.msk [vmem:[#allocation4 + $0x8] sm:$0xff] %vm43, 0.0
      %50 = vst.msk [vmem:[#allocation5] sm:$0xff] %vm43, 0.0
      %51 = vst.msk [vmem:[#allocation5 + $0x8] sm:$0xff] %vm43, 0.0
      %52 = vst.msk [vmem:[#allocation6] sm:$0xff] %vm43, 0.0
      %53 = vst.msk [vmem:[#allocation6 + $0x8] sm:$0xff] %vm43, 0.0
    $region21: #{pearson_loss.1} parent=1 // pred_fallthru
      _
    %v54 = vld [vmem:[#allocation7] sm:$0xff]
    %v55 = vld [vmem:[#allocation7 + $0x8] sm:$0xff]
    %v56 = vld [vmem:[#allocation7 + $0x10] sm:$0xff]
    %v57 = vld [vmem:[#allocation7 + $0x18] sm:$0xff]
    %v58 = vld [vmem:[#allocation9] sm:$0xff]
    %v59 = vld [vmem:[#allocation9 + $0x8] sm:$0xff]
    %v60 = vld [vmem:[#allocation9 + $0x10] sm:$0xff]
    %v61 = vld [vmem:[#allocation9 + $0x18] sm:$0xff]
    %v62 = vld [vmem:[#allocation2] sm:$0xff]
    %v63 = vld [vmem:[#allocation2 + $0x8] sm:$0xff]
    %v64 = vadd.f32 %v54, %v55
    %65 = vadd.xlane.f32.xlu0 %v64
    %v66 = vpop.xlane.xlu0 %65
    %v67 = vadd.f32 %v56, %v57
    %68 = vadd.xlane.f32.xlu0 %v67
    %v69 = vpop.xlane.xlu0 %68
    %v70 = vadd.f32 %v62, %v66
    %v71 = vadd.f32 %v63, %v69
    %vm72 = vcmask 7168
    %73 = vst.msk [vmem:[#allocation2] sm:$0xff] %vm72, %v70
    %74 = vst.msk [vmem:[#allocation2 + $0x8] sm:$0xff] %vm72, %v71
    %v75 = vld [vmem:[#allocation3] sm:$0xff]
    %v76 = vld [vmem:[#allocation3 + $0x8] sm:$0xff]
    %v77 = vadd.f32 %v58, %v59
    %78 = vadd.xlane.f32.xlu0 %v77
    %v79 = vpop.xlane.xlu0 %78
    %v80 = vadd.f32 %v60, %v61
    %81 = vadd.xlane.f32.xlu0 %v80
    %v82 = vpop.xlane.xlu0 %81
    %v83 = vadd.f32 %v75, %v79
    %v84 = vadd.f32 %v76, %v82
    %85 = vst.msk [vmem:[#allocation3] sm:$0xff] %vm72, %v83
    %86 = vst.msk [vmem:[#allocation3 + $0x8] sm:$0xff] %vm72, %v84
    %v87 = vld [vmem:[#allocation4] sm:$0xff]
    %v88 = vld [vmem:[#allocation4 + $0x8] sm:$0xff]
    %v89 = vmul.f32 %v54, %v54
    %v90 = vmul.f32 %v55, %v55
    %v91 = vmul.f32 %v56, %v56
    %v92 = vmul.f32 %v57, %v57
    %v93 = vadd.f32 %v89, %v90
    %94 = vadd.xlane.f32.xlu0 %v93
    %v95 = vpop.xlane.xlu0 %94
    %v96 = vadd.f32 %v91, %v92
    %97 = vadd.xlane.f32.xlu0 %v96
    %v98 = vpop.xlane.xlu0 %97
    %v99 = vadd.f32 %v87, %v95
    %v100 = vadd.f32 %v88, %v98
    %101 = vst.msk [vmem:[#allocation4] sm:$0xff] %vm72, %v99
    %102 = vst.msk [vmem:[#allocation4 + $0x8] sm:$0xff] %vm72, %v100
    %v103 = vld [vmem:[#allocation5] sm:$0xff]
    %v104 = vld [vmem:[#allocation5 + $0x8] sm:$0xff]
    %v105 = vmul.f32 %v58, %v58
    %v106 = vmul.f32 %v59, %v59
    %v107 = vmul.f32 %v60, %v60
    %v108 = vmul.f32 %v61, %v61
    %v109 = vadd.f32 %v105, %v106
    %110 = vadd.xlane.f32.xlu0 %v109
    %v111 = vpop.xlane.xlu0 %110
    %v112 = vadd.f32 %v107, %v108
    %113 = vadd.xlane.f32.xlu0 %v112
    %v114 = vpop.xlane.xlu0 %113
    %v115 = vadd.f32 %v103, %v111
    %v116 = vadd.f32 %v104, %v114
    %117 = vst.msk [vmem:[#allocation5] sm:$0xff] %vm72, %v115
    %118 = vst.msk [vmem:[#allocation5 + $0x8] sm:$0xff] %vm72, %v116
    %v119 = vld [vmem:[#allocation6] sm:$0xff]
    %v120 = vld [vmem:[#allocation6 + $0x8] sm:$0xff]
    %v121 = vmul.f32 %v54, %v58
    %v122 = vmul.f32 %v55, %v59
    %v123 = vmul.f32 %v56, %v60
    %v124 = vmul.f32 %v57, %v61
    %v125 = vadd.f32 %v121, %v122
    %126 = vadd.xlane.f32.xlu0 %v125
    %v127 = vpop.xlane.xlu0 %126
    %v128 = vadd.f32 %v123, %v124
    %129 = vadd.xlane.f32.xlu0 %v128
    %v130 = vpop.xlane.xlu0 %129
    %v131 = vadd.f32 %v119, %v127
    %v132 = vadd.f32 %v120, %v130
    %133 = vst.msk [vmem:[#allocation6] sm:$0xff] %vm72, %v131
    %134 = vst.msk [vmem:[#allocation6 + $0x8] sm:$0xff] %vm72, %v132
    // Predicated region
    $region22: #{pearson_loss.1} parent=1 // pred_check
      %p135 = pneg %p39
    $region23: #{pearson_loss.1} parent=1 // pred_check_branch
      %137 = sbr.rel (%p135) target = $region25
    $region24: #{pearson_loss.1} parent=1 // pred_region
      %v138 = vld [vmem:[#allocation2] sm:$0xff]
      %v139 = vld [vmem:[#allocation2 + $0x8] sm:$0xff]
      %v140 = vld [vmem:[#allocation3] sm:$0xff]
      %v141 = vld [vmem:[#allocation3 + $0x8] sm:$0xff]
      %v142 = vld [vmem:[#allocation4] sm:$0xff]
      %v143 = vld [vmem:[#allocation4 + $0x8] sm:$0xff]
      %v144 = vmul.f32 %v138, %v138
      %v145 = vmul.f32 %v139, %v139
      %v146 = vmul.f32 %v144, 0.00390625
      %v147 = vmul.f32 %v145, 0.00390625
      %v148 = vsub.f32 %v142, %v146
      %v149 = vsub.f32 %v143, %v147
      %v150 = vld [vmem:[#allocation5] sm:$0xff]
      %v151 = vld [vmem:[#allocation5 + $0x8] sm:$0xff]
      %v152 = vmul.f32 %v140, %v140
      %v153 = vmul.f32 %v141, %v141
      %v154 = vmul.f32 %v152, 0.00390625
      %v155 = vmul.f32 %v153, 0.00390625
      %v156 = vsub.f32 %v150, %v154
      %v157 = vsub.f32 %v151, %v155
      %v158 = vld [vmem:[#allocation6] sm:$0xff]
      %v159 = vld [vmem:[#allocation6 + $0x8] sm:$0xff]
      %v160 = vmul.f32 %v138, %v140
      %v161 = vmul.f32 %v139, %v141
      %v162 = vmul.f32 %v160, 0.00390625
      %v163 = vmul.f32 %v161, 0.00390625
      %v164 = vsub.f32 %v158, %v162
      %v165 = vsub.f32 %v159, %v163
      %v166 = vmul.f32 %v148, 0.003921569
      %v167 = vmul.f32 %v149, 0.003921569
      %v168 = vmul.f32 %v156, 0.003921569
      %v169 = vmul.f32 %v157, 0.003921569
      %v170 = vmul.f32 %v148, %v156
      %v171 = vmul.f32 %v149, %v157
      %v172 = vrsqrt.pop %v170
      %v173 = vrsqrt.pop %v171
      %v174 = vmul.f32 %v164, %v172
      %v175 = vmul.f32 %v165, %v173
      %vm176 = vcmp.gt.f32.partialorder %v166, 1e-05
      %vm177 = vcmp.gt.f32.partialorder %v167, 1e-05
      %vm178 = vcmp.gt.f32.partialorder %v168, 1e-05
      %vm179 = vcmp.gt.f32.partialorder %v169, 1e-05
      %vm180 = vmand %vm176, %vm178
      %vm181 = vmand %vm177, %vm179
      %vm182 = vcmp.ne.f32.partialorder %v174, %v174
      %vm183 = vcmp.ne.f32.partialorder %v175, %v175
      %vm184 = vmxor %vm182, 1
      %vm185 = vmxor %vm183, 1
      %vm186 = vmand %vm180, %vm184
      %vm187 = vmand %vm181, %vm185
      %v188 = vsub.f32 1.0, %v174
      %v189 = vsub.f32 1.0, %v175
      %v190 = vsel %vm186, %v188, 1.0
      %v191 = vsel %vm187, %v189, 1.0
      %192 = vst.msk [vmem:[%s2] sm:$0xff] %vm72, %v190
      %193 = vst.msk [vmem:[%s2 + $0x8] sm:$0xff] %vm72, %v191
    $region25: #{pearson_loss.1} parent=1 // pred_fallthru
      _
    // Predicated region
    $region26: #{pearson_loss.1} parent=1 // pred_check
      _
    $region27: #{pearson_loss.1} parent=1 // pred_check_branch
      %195 = sbr.rel (0) target = $region29
    $region28: #{pearson_loss.1} parent=1 // pred_region
      _
    $region29: #{pearson_loss.1} parent=1 // pred_fallthru
      _
    // Predicated region
    $region30: #{pearson_loss.1} parent=1 // pred_check
      _
    $region31: #{pearson_loss.1} parent=1 // pred_check_branch
      %197 = sbr.rel (0) target = $region33
    $region32: #{pearson_loss.1} parent=1 // pred_region
      _
    $region33: #{pearson_loss.1} parent=1 // pred_fallthru
      _
    %198 = vsyncpa [#allocation8], 1
    %199 = vsyncpa [#allocation10], 1

</llo_original>
